<compile_context>
chip_gen: v6e
topology: v6e:2x2x1
jax: 0.10.0
libtpu: 0.0.40
codegen_flags: <defaults>
</compile_context>

<pallas_src>
import jax
import jax.numpy as jnp
from jax.experimental import pallas as pl
from jax.experimental.pallas import tpu as pltpu


def _layerscale_kernel(x_ref, gamma_ref, o_ref):
    # x_ref: (TM, D) tile of the flattened input
    # gamma_ref: (1, D) gamma, resident in VMEM (constant block index)
    # o_ref: (TM, D) output tile
    o_ref[...] = x_ref[...] * gamma_ref[...]


# Per-tile byte budget: BlockSpec double-buffers both the input and output
# tiles (~4x tile bytes live), so 2 MiB tiles stay well inside even v5e's
# 16 MiB default scoped VMEM and v7x's tighter 64 MiB physical / 2-TC budget,
# while being big enough (512-1024 rows for typical D) for ~85% of HBM BW.
_MAX_TILE_BYTES = 2 * 1024 * 1024
# Don't shrink tiles below this when rebalancing for v7x megacore; keeps the
# ~0.35 us per-grid-step overhead amortized.
_MIN_TILE_BYTES = 512 * 1024


def _sublanes(dtype) -> int:
    """Rows per vreg for this dtype: 8 (f32), 16 (bf16/f16), 32 (int8/fp8)."""
    return max(8, 32 // jnp.dtype(dtype).itemsize)


def layer_scale(x: jax.Array, gamma: jax.Array, *, inplace: bool = False) -> jax.Array:
    """LayerScale forward: out = x * gamma.  x: (..., D); gamma: (D,)."""
    orig_shape = x.shape
    D = orig_shape[-1]
    assert gamma.shape == (D,), f"gamma must be ({D},), got {gamma.shape}"
    # NOTE: gamma is cast to x.dtype before the multiply (standard mixed-
    # precision practice); for bf16 x this quantizes gamma rather than
    # multiplying in f32 — a tiny deviation from PyTorch type promotion.
    gamma = gamma.astype(x.dtype)

    # Flatten leading axes: the op is purely elementwise per row.
    R = 1
    for s in orig_shape[:-1]:
        R *= s
    x2 = x.reshape(R, D)
    g = gamma

    itemsize = jnp.dtype(x.dtype).itemsize
    sub = _sublanes(x.dtype)

    # Lane-density fix-up: if D < 128 (and divides 128), fold rows into the
    # lane axis so the output's last dim is a multiple of 128 (unmasked
    # full-width vst instead of masked partial stores). Pad rows if needed so
    # the fold always applies; padded rows are sliced off afterwards.
    rows_orig = R
    padded_rows = 0
    if D < 128 and 128 % D == 0:
        fold = 128 // D
        if R % fold != 0:
            padded_rows = fold - (R % fold)
            x2 = jnp.pad(x2, ((0, padded_rows), (0, 0)))
            R = R + padded_rows
        R = R // fold
        D = D * fold
        x2 = x2.reshape(R, D)
        g = jnp.tile(g, fold)
    g2 = g.reshape(1, D)

    total_bytes = R * D * itemsize
    if total_bytes <= _MAX_TILE_BYTES or R <= sub:
        # Whole flattened array fits one tile (or too few rows to tile):
        # single full-extent block — legal even when R % sublanes != 0 —
        # avoids a spurious tiny remainder grid step.
        tm = R
    else:
        rows_budget = max(sub, (_MAX_TILE_BYTES // (D * itemsize)) // sub * sub)
        tm = min(1024, rows_budget, (R // sub) * sub)
        # v7x megacore balance: a 1-3 step "parallel" grid leaves one of the
        # two TensorCores idle/imbalanced.  Halve the row tile (keeping it
        # sublane-aligned and above the minimum tile size) until there are at
        # least 4 grid steps.  Costs nothing on single-TC v5e/v6e.
        while (pl.cdiv(R, tm) < 4
               and (tm // 2) % sub == 0
               and (tm // 2) * D * itemsize >= _MIN_TILE_BYTES):
            tm //= 2

    grid = (pl.cdiv(R, tm),)  # remainder tile (if any) handled by Pallas masking

    cost = pl.CostEstimate(
        flops=R * D,
        transcendentals=0,
        bytes_accessed=2 * R * D * itemsize + D * itemsize,
    )

    kwargs = {}
    if inplace:
        # Mirrors PyTorch's x.mul_(gamma): the output buffer aliases the
        # (flattened) input.  In/out BlockSpecs share the same index_map, so
        # in-place is safe; XLA copies first if the caller did not donate x.
        kwargs["input_output_aliases"] = {0: 0}

    out2 = pl.pallas_call(
        _layerscale_kernel,
        out_shape=jax.ShapeDtypeStruct((R, D), x.dtype),
        grid=grid,
        in_specs=[
            pl.BlockSpec((tm, D), lambda i: (i, 0)),
            # Constant block index -> gamma stays resident in VMEM, no re-DMA.
            pl.BlockSpec((1, D), lambda i: (0, 0)),
        ],
        out_specs=pl.BlockSpec((tm, D), lambda i: (i, 0)),
        compiler_params=pltpu.CompilerParams(
            dimension_semantics=("parallel",),
        ),
        cost_estimate=cost,
        **kwargs,
    )(x2, g2)

    if padded_rows:
        out2 = out2.reshape(rows_orig + padded_rows, orig_shape[-1])[:rows_orig]
    return out2.reshape(orig_shape)


if __name__ == "__main__":
    key = jax.random.PRNGKey(0)
    init_values = 1e-05

    # --- 1) Small ViT-style input (B, N, dim): exercises the D<128 lane-fold
    #        and the single full-extent-tile path -------------------------------
    B, N, D = 2, 8, 32
    gamma = init_values * jnp.ones((D,), dtype=jnp.float32)
    x = jax.random.normal(key, (B, N, D), dtype=jnp.float32)

    out = jax.block_until_ready(layer_scale(x, gamma))
    ref = x * gamma.reshape(1, 1, D)
    assert out.shape == (B, N, D) and out.dtype == x.dtype
    assert jnp.allclose(out, ref, atol=1e-6, rtol=1e-6)

    # --- 2) D<128 with rows NOT divisible by the fold factor: exercises the
    #        row-padding path ---------------------------------------------------
    B1, N1, D1 = 1, 7, 64
    gamma1 = init_values * jnp.ones((D1,), dtype=jnp.float32)
    x1 = jax.random.normal(jax.random.PRNGKey(2), (B1, N1, D1), dtype=jnp.float32)
    out1 = jax.block_until_ready(layer_scale(x1, gamma1))
    ref1 = x1 * gamma1.reshape(1, 1, D1)
    assert out1.shape == (B1, N1, D1)
    assert jnp.allclose(out1, ref1, atol=1e-6, rtol=1e-6)

    # --- 3) Multi-step grid + remainder tile + megacore rebalance --------------
    B2, N2, D2 = 2, 1000, 512
    gamma2 = init_values * jnp.ones((D2,), dtype=jnp.float32)
    x2 = jax.random.normal(jax.random.PRNGKey(1), (B2, N2, D2), dtype=jnp.float32)
    out2 = jax.block_until_ready(layer_scale(x2, gamma2))
    ref2 = x2 * gamma2.reshape(1, 1, D2)
    assert out2.shape == (B2, N2, D2)
    assert jnp.allclose(out2, ref2, atol=1e-6, rtol=1e-6)

    # --- 4) bf16 activations (16-row sublane packing) + inplace aliasing -------
    B3, N3, D3 = 2, 64, 256
    gamma3 = (init_values * jnp.ones((D3,), dtype=jnp.float32))
    x3 = jax.random.normal(jax.random.PRNGKey(3), (B3, N3, D3), dtype=jnp.bfloat16)
    out3 = jax.block_until_ready(layer_scale(x3, gamma3, inplace=True))
    ref3 = x3 * gamma3.astype(jnp.bfloat16).reshape(1, 1, D3)
    assert out3.shape == (B3, N3, D3) and out3.dtype == jnp.bfloat16
    assert jnp.allclose(out3.astype(jnp.float32), ref3.astype(jnp.float32),
                        atol=1e-2, rtol=1e-2)

    print("KERNEL_OK")
</pallas_src>

<mosaic_0001>
module attributes {stable_mosaic.version = 11 : i64} {
  func.func @_layerscale_kernel(%arg0: i32, %arg1: memref<4x128xf32, #tpu.memory_space<vmem>>, %arg2: memref<1x128xf32, #tpu.memory_space<vmem>>, %arg3: memref<4x128xf32, #tpu.memory_space<vmem>>) attributes {dimension_semantics = [#tpu.dimension_semantics<parallel>], iteration_bounds = array<i64: 1>, scalar_prefetch = 0 : i64, scratch_operands = 0 : i64, tpu.core_type = #tpu.core_type<tc>, window_params = [{transform_indices = @transform_0, window_bounds = array<i64: 4, 128>}, {pipeline_mode = #tpu.pipeline_mode<synchronous>, transform_indices = @transform_1, window_bounds = array<i64: 1, 128>}, {transform_indices = @transform_2, window_bounds = array<i64: 4, 128>}]} {
    %c0 = arith.constant 0 : index
    %c0_0 = arith.constant 0 : index
    %0 = vector.load %arg1[%c0, %c0_0] : memref<4x128xf32, #tpu.memory_space<vmem>>, vector<4x128xf32>
    %c0_1 = arith.constant 0 : index
    %c0_2 = arith.constant 0 : index
    %1 = vector.load %arg2[%c0_1, %c0_2] : memref<1x128xf32, #tpu.memory_space<vmem>>, vector<1x128xf32>
    %2 = vector.broadcast %1 : vector<1x128xf32> to vector<4x128xf32>
    %3 = arith.mulf %0, %2 : vector<4x128xf32>
    %c0_3 = arith.constant 0 : index
    %c0_4 = arith.constant 0 : index
    %4 = vector.load %arg3[%c0_3, %c0_4] : memref<4x128xf32, #tpu.memory_space<vmem>>, vector<4x128xf32>
    tpu.vector_store %arg3[%c0_3, %c0_4], %3 {strides = array<i32>} : memref<4x128xf32, #tpu.memory_space<vmem>>, vector<4x128xf32>,
    return
  }
  func.func @transform_0(%arg0: i32) -> (i32, i32) {
    %c0_i32 = arith.constant 0 : i32
    %c0_i32_0 = arith.constant 0 : i32
    return %arg0, %c0_i32 : i32, i32
  }
  func.func @transform_1(%arg0: i32) -> (i32, i32) {
    %c0_i32 = arith.constant 0 : i32
    %c0_i32_0 = arith.constant 0 : i32
    %c0_i32_1 = arith.constant 0 : i32
    return %c0_i32, %c0_i32_0 : i32, i32
  }
  func.func @transform_2(%arg0: i32) -> (i32, i32) {
    %c0_i32 = arith.constant 0 : i32
    %c0_i32_0 = arith.constant 0 : i32
    return %arg0, %c0_i32 : i32, i32
  }
}

</mosaic_0001>

<llo_original>
// kernel: tpu_custom_call.1
$region0: #{tpu_custom_call.1}
  #allocation0 [shape = 'u32[]', space=smem, size = 0x4, offset = 0x4, fixed_abs, tag = 'smem constant byte address 0x4 - core index']
  #allocation1 [shape = 'u32[144,128]{1,0:T(1,128)}', space=vmem, size = 0x12000, scoped, tag = 'internal scratch']
  %s0 = inlined_call_operand.hbm [shape: f32[4,128], index: 0, kind: input, shape index: {}]
  %s1 = inlined_call_operand.vmem [shape: f32[1,128], index: 1, kind: input, shape index: {}]
  %s2 = inlined_call_operand.hbm [shape: f32[4,128], index: 2, kind: output, shape index: {}]
  %s3 = sld [smem:[#allocation0]]
  $region22: #{tpu_custom_call.1} parent=0
    _
  %s5 = ssub.s32 1, %s3
  %s6 = scalar_select 0, %s5, %s3
  $region1: #{tpu_custom_call.1} parent=0
    #allocation2 [shape = 'u8[2048]{0}', space=vmem, size = 0x800, scoped, tag = 'input window, operand 0, single buffered']
    #allocation3 [shape = 's32[1]{0}', space=sflag, size = 0x4, scoped, tag = 'scoped memory for tpu_custom_call.1']
    #allocation4 [shape = 's32[1]{0}', space=sflag, size = 0x4, scoped, tag = 'scoped memory for tpu_custom_call.1']
    #allocation5 [shape = 'u8[2048]{0}', space=vmem, size = 0x800, scoped, tag = 'output window, operand 0, single buffered']
    %7 = vsyncpa [#allocation3], 0
    %8 = vsyncpa [#allocation4], 0
    // Predicated region
    $region2: #{tpu_custom_call.1} parent=1 // pred_check
      _
    $region3: #{tpu_custom_call.1} parent=1 // pred_check_branch
      %10 = sbr.rel (0) target = $region5
    $region4: #{tpu_custom_call.1} parent=1 // pred_region
      %s12 = ssub.s32 64, 64
      %13 = vsyncadd [#allocation3], %s12
      %s15 = sshll.u32 [#allocation2], 4
      %s16 = int_to_ptr.vmem [resolvable:$true] %s15
      %18 = dma.hbm_to_vmem [thread:$0]  %s0, 64, %s16, [#allocation3]
    $region5: #{tpu_custom_call.1} parent=1 // pred_fallthru
      _
    // Predicated region
    $region6: #{tpu_custom_call.1} parent=1 // pred_check
      _
    $region7: #{tpu_custom_call.1} parent=1 // pred_check_branch
      %20 = sbr.rel (0) target = $region9
    $region8: #{tpu_custom_call.1} parent=1 // pred_region
      _
    $region9: #{tpu_custom_call.1} parent=1 // pred_fallthru
      _
    // Predicated region
    $region10: #{tpu_custom_call.1} parent=1 // pred_check
      _
    $region11: #{tpu_custom_call.1} parent=1 // pred_check_branch
      %22 = sbr.rel (0) target = $region13
    $region12: #{tpu_custom_call.1} parent=1 // pred_region
      %23 = dma.done [#allocation3], 64
    $region13: #{tpu_custom_call.1} parent=1 // pred_fallthru
      _
    %v24 = vld [vmem:[#allocation2] sm:$0xf]
    %v25 = vld [vmem:[%s1] sm:$0x1]
    %v27 = vlaneseq
    %v28 = vshrl.u32 %v27, 7
    %v29 = vsub.s32 0, %v28
    %v30 = vrot.slane %v25, %v29
    %v32 = vmul.f32 %v24, %v30
    %33 = vst [vmem:[#allocation5] sm:$0xf] %v32
    // Predicated region
    $region14: #{tpu_custom_call.1} parent=1 // pred_check
      _
    $region15: #{tpu_custom_call.1} parent=1 // pred_check_branch
      %35 = sbr.rel (0) target = $region17
    $region16: #{tpu_custom_call.1} parent=1 // pred_region
      %s37 = ssub.s32 64, 64
      %38 = vsyncadd [#allocation4], %s37
      %s40 = sshll.u32 [#allocation5], 4
      %s41 = int_to_ptr.vmem [resolvable:$true] %s40
      %43 = dma.vmem_to_hbm [thread:$0]  %s41, 64, %s2, [#allocation4]
    $region17: #{tpu_custom_call.1} parent=1 // pred_fallthru
      _
    // Predicated region
    $region18: #{tpu_custom_call.1} parent=1 // pred_check
      _
    $region19: #{tpu_custom_call.1} parent=1 // pred_check_branch
      %45 = sbr.rel (0) target = $region21
    $region20: #{tpu_custom_call.1} parent=1 // pred_region
      %46 = dma.done [#allocation4], 64
    $region21: #{tpu_custom_call.1} parent=1 // pred_fallthru
      _
    %47 = vsyncpa [#allocation3], 1
    %48 = vsyncpa [#allocation4], 1

</llo_original>
